<compile_context>
chip_gen: v5e
topology: v5e:2x2
jax: 0.10.0
libtpu: 0.0.40
codegen_flags: <defaults>
</compile_context>

<pallas_src>
import numpy as np

import jax
import jax.numpy as jnp
from jax.experimental import pallas as pl
from jax.experimental.pallas import tpu as pltpu


def _senet_kernel(x_ref, w1_ref, b1_ref, w2_ref, b2_ref,
                  ebk_ref, ekb_ref, ekc_ref, out_ref):
    # x_ref / out_ref: (RB, HW) where RB = bb * C rows of the current batch block.
    x = x_ref[...]
    xf = x.astype(jnp.float32)

    # Squeeze: per-(batch, channel) mean over the spatial (lane) axis -> (RB, 1).
    m = jnp.mean(xf, axis=-1, keepdims=True)

    # "Un-flatten" (RB, 1) -> (bb, C) with one-hot selector matmuls; this avoids an
    # in-kernel reshape across the sublane/lane layout.
    e_bk = ebk_ref[...]                       # (bb, RB)   e_bk[b, k] = [k // C == b]
    e_kc = ekc_ref[...]                       # (RB, C)    e_kc[k, c] = [k %  C == c]
    avg = jnp.dot(e_bk, e_kc * m, preferred_element_type=jnp.float32)      # (bb, C)

    # Excitation MLP: Linear(C -> ratio*C) + ReLU, Linear(ratio*C -> C) + Sigmoid.
    h = jnp.dot(avg, w1_ref[...].astype(jnp.float32),
                preferred_element_type=jnp.float32) + b1_ref[...].astype(jnp.float32)
    h = jnp.maximum(h, 0.0)
    g = jnp.dot(h, w2_ref[...].astype(jnp.float32),
                preferred_element_type=jnp.float32) + b2_ref[...].astype(jnp.float32)
    g = jax.nn.sigmoid(g)                     # (bb, C)

    # Flatten the gate back to one scale per row: g_rows[k] = g[k // C, k % C].
    e_kb = ekb_ref[...]                       # (RB, bb)
    g_rep = jnp.dot(e_kb, g, preferred_element_type=jnp.float32)           # (RB, C)
    g_rows = jnp.sum(g_rep * e_kc, axis=-1, keepdims=True)                 # (RB, 1)

    # Scale and store in the caller's dtype (lane-dense store over HW).
    out_ref[...] = (xf * g_rows).astype(out_ref.dtype)


def _choose_batch_block(b, c, hw, itemsize, target_bytes=2 << 20):
    """Largest divisor `bb` of b such that the (bb*C, HW) block is sublane-dense
    (bb*C % 8 == 0, or bb == b so the block equals the full array) and streams
    roughly `target_bytes` per grid step (amortizes per-step overhead)."""
    divisors = [d for d in range(1, b + 1) if b % d == 0]
    valid = [d for d in divisors if d == b or (d * c) % 8 == 0]
    row_bytes = max(1, c * hw * itemsize)
    fitting = [d for d in valid if d * row_bytes <= target_bytes]
    if fitting:
        return max(fitting)
    return min(valid)


def senet_forward(x_nchw, w1, b1, w2, b2):
    """x_nchw: (B, C, H, W).  w1: (C, hidden), b1: (hidden,), w2: (hidden, C),
    b2: (C,).  Returns (B, C, H, W) in the dtype of x_nchw."""
    b, c, h, w = x_nchw.shape
    hw = h * w
    dtype = x_nchw.dtype
    itemsize = jnp.dtype(dtype).itemsize
    hidden = w1.shape[1]

    # Lane-dense 2-D layout: rows = batch*channel, lanes = spatial.
    # TODO(synk): for spatial sizes not a multiple of 128 (e.g. 7x7), pad HW up to
    # 128 in the wrapper to avoid masked partial stores; for very large C*HW that
    # no longer fits VMEM alongside the weights, fall back to a two-phase
    # (accumulate-then-rescale) structure.
    x2 = x_nchw.reshape(b * c, hw)

    bb = _choose_batch_block(b, c, hw, itemsize)
    rb = bb * c
    grid = (b // bb,)

    # Tiny one-hot selector matrices used to move between the packed row space
    # (bb*C, .) and the (bb, C) space of the excitation MLP without reshapes.
    rows = np.arange(rb)
    e_bk = (rows[None, :] // c == np.arange(bb)[:, None]).astype(np.float32)  # (bb, RB)
    e_kb = np.ascontiguousarray(e_bk.T)                                       # (RB, bb)
    e_kc = (rows[:, None] % c == np.arange(c)[None, :]).astype(np.float32)    # (RB, C)

    b1_2d = b1.reshape(1, hidden)
    b2_2d = b2.reshape(1, c)

    def resident(arr):
        shape = tuple(arr.shape)
        return pl.BlockSpec(shape, lambda i: (0,) * len(shape))

    x_spec = pl.BlockSpec((rb, hw), lambda i: (i, 0))
    out_spec = pl.BlockSpec((rb, hw), lambda i: (i, 0))

    # VMEM budget: double-buffered x/out tiles + resident params/selectors,
    # sized with headroom but kept under the v7x 64 MiB per-core capacity.
    blk_bytes = rb * hw * itemsize
    resident_bytes = sum(
        int(np.prod(a.shape)) * jnp.dtype(a.dtype).itemsize
        for a in (w1, b1_2d, w2, b2_2d))
    resident_bytes += (e_bk.size + e_kb.size + e_kc.size) * 4
    est = 4 * blk_bytes + 2 * resident_bytes
    vmem_limit = int(min(max(2 * est, 16 << 20), 56 << 20))

    cost = pl.CostEstimate(
        flops=int(2 * b * c * hw + 4 * b * c * hidden),
        transcendentals=int(b * (hidden + c)),
        bytes_accessed=int(2 * b * c * hw * itemsize + resident_bytes),
    )

    # NOTE: input_output_aliases intentionally omitted so the caller's x buffer
    # stays valid for later use (e.g. the reference check below).
    out2 = pl.pallas_call(
        _senet_kernel,
        out_shape=jax.ShapeDtypeStruct((b * c, hw), dtype),
        grid=grid,
        in_specs=[
            x_spec,
            resident(w1), resident(b1_2d), resident(w2), resident(b2_2d),
            resident(e_bk), resident(e_kb), resident(e_kc),
        ],
        out_specs=out_spec,
        compiler_params=pltpu.CompilerParams(
            dimension_semantics=("parallel",),   # shard batch tiles across TCs (v7x)
            vmem_limit_bytes=vmem_limit,
        ),
        cost_estimate=cost,
    )(x2, w1, b1_2d, w2, b2_2d,
      jnp.asarray(e_bk), jnp.asarray(e_kb), jnp.asarray(e_kc))

    return out2.reshape(b, c, h, w)


def init_senet_params(key, input_channel, ratio=16):
    """Deterministic init mirroring nn.Linear default (U(-1/sqrt(fan_in), +))."""
    hidden = int(ratio * input_channel)
    k1, k2, k3, k4 = jax.random.split(key, 4)
    bound1 = 1.0 / float(np.sqrt(input_channel))
    bound2 = 1.0 / float(np.sqrt(hidden))
    # Stored transposed relative to PyTorch (we compute avg @ W1); same math.
    w1 = jax.random.uniform(k1, (input_channel, hidden), jnp.float32, -bound1, bound1)
    b1 = jax.random.uniform(k2, (hidden,), jnp.float32, -bound1, bound1)
    w2 = jax.random.uniform(k3, (hidden, input_channel), jnp.float32, -bound2, bound2)
    b2 = jax.random.uniform(k4, (input_channel,), jnp.float32, -bound2, bound2)
    return w1, b1, w2, b2


if __name__ == "__main__":
    key = jax.random.PRNGKey(0)
    kx, kp = jax.random.split(key)

    B, C, H, W = 2, 4, 16, 16
    ratio = 16

    x = jax.random.normal(kx, (B, C, H, W), jnp.float32)
    w1, b1, w2, b2 = init_senet_params(kp, C, ratio)

    out = senet_forward(x, w1, b1, w2, b2)
    jax.block_until_ready(out)

    # Pure-JAX reference of the same math.
    avg = jnp.mean(x.reshape(B, C, H * W), axis=-1)
    h_ref = jnp.maximum(avg @ w1 + b1, 0.0)
    g_ref = jax.nn.sigmoid(h_ref @ w2 + b2)
    ref = x * g_ref[:, :, None, None]

    assert out.shape == x.shape
    assert jnp.allclose(out, ref, atol=1e-5, rtol=1e-5)

    print("KERNEL_OK")
</pallas_src>

<mosaic_0001>
module attributes {stable_mosaic.version = 11 : i64} {
  func.func @_senet_kernel(%arg0: i32, %arg1: memref<8x256xf32, #tpu.memory_space<vmem>>, %arg2: memref<4x64xf32, #tpu.memory_space<vmem>>, %arg3: memref<1x64xf32, #tpu.memory_space<vmem>>, %arg4: memref<64x4xf32, #tpu.memory_space<vmem>>, %arg5: memref<1x4xf32, #tpu.memory_space<vmem>>, %arg6: memref<2x8xf32, #tpu.memory_space<vmem>>, %arg7: memref<8x2xf32, #tpu.memory_space<vmem>>, %arg8: memref<8x4xf32, #tpu.memory_space<vmem>>, %arg9: memref<8x256xf32, #tpu.memory_space<vmem>>) attributes {dimension_semantics = [#tpu.dimension_semantics<parallel>], iteration_bounds = array<i64: 1>, scalar_prefetch = 0 : i64, scratch_operands = 0 : i64, tpu.core_type = #tpu.core_type<tc>, window_params = [{transform_indices = @transform_0, window_bounds = array<i64: 8, 256>}, {pipeline_mode = #tpu.pipeline_mode<synchronous>, transform_indices = @transform_1, window_bounds = array<i64: 4, 64>}, {pipeline_mode = #tpu.pipeline_mode<synchronous>, transform_indices = @transform_2, window_bounds = array<i64: 1, 64>}, {pipeline_mode = #tpu.pipeline_mode<synchronous>, transform_indices = @transform_3, window_bounds = array<i64: 64, 4>}, {pipeline_mode = #tpu.pipeline_mode<synchronous>, transform_indices = @transform_4, window_bounds = array<i64: 1, 4>}, {pipeline_mode = #tpu.pipeline_mode<synchronous>, transform_indices = @transform_5, window_bounds = array<i64: 2, 8>}, {pipeline_mode = #tpu.pipeline_mode<synchronous>, transform_indices = @transform_6, window_bounds = array<i64: 8, 2>}, {pipeline_mode = #tpu.pipeline_mode<synchronous>, transform_indices = @transform_7, window_bounds = array<i64: 8, 4>}, {transform_indices = @transform_8, window_bounds = array<i64: 8, 256>}]} {
    %c0 = arith.constant 0 : index
    %c0_0 = arith.constant 0 : index
    %0 = vector.load %arg1[%c0, %c0_0] : memref<8x256xf32, #tpu.memory_space<vmem>>, vector<8x256xf32>
    %cst = arith.constant dense<0.000000e+00> : vector<8xf32>
    %1 = vector.multi_reduction <add>, %0, %cst [1] : vector<8x256xf32> to vector<8xf32>
    %2 = vector.shape_cast %1 : vector<8xf32> to vector<8x1xf32>
    %cst_1 = arith.constant 2.560000e+02 : f32
    %3 = vector.broadcast %cst_1 : f32 to vector<8x1xf32>
    %4 = arith.divf %2, %3 : vector<8x1xf32>
    %c0_2 = arith.constant 0 : index
    %c0_3 = arith.constant 0 : index
    %5 = vector.load %arg6[%c0_2, %c0_3] : memref<2x8xf32, #tpu.memory_space<vmem>>, vector<2x8xf32>
    %c0_4 = arith.constant 0 : index
    %c0_5 = arith.constant 0 : index
    %6 = vector.load %arg8[%c0_4, %c0_5] : memref<8x4xf32, #tpu.memory_space<vmem>>, vector<8x4xf32>
    %7 = vector.broadcast %4 : vector<8x1xf32> to vector<8x4xf32>
    %8 = arith.mulf %6, %7 : vector<8x4xf32>
    %cst_6 = arith.constant dense<0.000000e+00> : vector<2x4xf32>
    %9 = tpu.matmul %5, %8, %cst_6 {dimension_numbers = #tpu.dot_dimension_numbers<[1], [0], [0], [1], [0, 0, 1, 1], [], []>} : vector<2x8xf32>, vector<8x4xf32>, vector<2x4xf32> -> vector<2x4xf32>
    %c0_7 = arith.constant 0 : index
    %c0_8 = arith.constant 0 : index
    %10 = vector.load %arg2[%c0_7, %c0_8] : memref<4x64xf32, #tpu.memory_space<vmem>>, vector<4x64xf32>
    %cst_9 = arith.constant dense<0.000000e+00> : vector<2x64xf32>
    %11 = tpu.matmul %9, %10, %cst_9 {dimension_numbers = #tpu.dot_dimension_numbers<[1], [0], [0], [1], [0, 0, 1, 1], [], []>} : vector<2x4xf32>, vector<4x64xf32>, vector<2x64xf32> -> vector<2x64xf32>
    %c0_10 = arith.constant 0 : index
    %c0_11 = arith.constant 0 : index
    %12 = vector.load %arg3[%c0_10, %c0_11] : memref<1x64xf32, #tpu.memory_space<vmem>>, vector<1x64xf32>
    %13 = vector.broadcast %12 : vector<1x64xf32> to vector<2x64xf32>
    %14 = arith.addf %11, %13 : vector<2x64xf32>
    %cst_12 = arith.constant 0.000000e+00 : f32
    %15 = vector.broadcast %cst_12 : f32 to vector<2x64xf32>
    %16 = arith.maximumf %14, %15 : vector<2x64xf32>
    %c0_13 = arith.constant 0 : index
    %c0_14 = arith.constant 0 : index
    %17 = vector.load %arg4[%c0_13, %c0_14] : memref<64x4xf32, #tpu.memory_space<vmem>>, vector<64x4xf32>
    %cst_15 = arith.constant dense<0.000000e+00> : vector<2x4xf32>
    %18 = tpu.matmul %16, %17, %cst_15 {dimension_numbers = #tpu.dot_dimension_numbers<[1], [0], [0], [1], [0, 0, 1, 1], [], []>} : vector<2x64xf32>, vector<64x4xf32>, vector<2x4xf32> -> vector<2x4xf32>
    %c0_16 = arith.constant 0 : index
    %c0_17 = arith.constant 0 : index
    %19 = vector.load %arg5[%c0_16, %c0_17] : memref<1x4xf32, #tpu.memory_space<vmem>>, vector<1x4xf32>
    %20 = vector.broadcast %19 : vector<1x4xf32> to vector<2x4xf32>
    %21 = arith.addf %18, %20 : vector<2x4xf32>
    %22 = arith.negf %21 : vector<2x4xf32>
    %23 = math.exp %22 : vector<2x4xf32>
    %cst_18 = arith.constant 1.000000e+00 : f32
    %24 = vector.broadcast %cst_18 : f32 to vector<2x4xf32>
    %25 = arith.addf %24, %23 : vector<2x4xf32>
    %26 = arith.divf %24, %25 : vector<2x4xf32>
    %c0_19 = arith.constant 0 : index
    %c0_20 = arith.constant 0 : index
    %27 = vector.load %arg7[%c0_19, %c0_20] : memref<8x2xf32, #tpu.memory_space<vmem>>, vector<8x2xf32>
    %cst_21 = arith.constant dense<0.000000e+00> : vector<8x4xf32>
    %28 = tpu.matmul %27, %26, %cst_21 {dimension_numbers = #tpu.dot_dimension_numbers<[1], [0], [0], [1], [0, 0, 1, 1], [], []>} : vector<8x2xf32>, vector<2x4xf32>, vector<8x4xf32> -> vector<8x4xf32>
    %29 = arith.mulf %28, %6 : vector<8x4xf32>
    %cst_22 = arith.constant dense<0.000000e+00> : vector<8xf32>
    %30 = vector.multi_reduction <add>, %29, %cst_22 [1] : vector<8x4xf32> to vector<8xf32>
    %31 = vector.shape_cast %30 : vector<8xf32> to vector<8x1xf32>
    %32 = vector.broadcast %31 : vector<8x1xf32> to vector<8x256xf32>
    %33 = arith.mulf %0, %32 : vector<8x256xf32>
    %c0_23 = arith.constant 0 : index
    %c0_24 = arith.constant 0 : index
    %34 = vector.load %arg9[%c0_23, %c0_24] : memref<8x256xf32, #tpu.memory_space<vmem>>, vector<8x256xf32>
    tpu.vector_store %arg9[%c0_23, %c0_24], %33 {strides = array<i32>} : memref<8x256xf32, #tpu.memory_space<vmem>>, vector<8x256xf32>,
    return
  }
  func.func @transform_0(%arg0: i32) -> (i32, i32) {
    %c0_i32 = arith.constant 0 : i32
    %c0_i32_0 = arith.constant 0 : i32
    return %arg0, %c0_i32 : i32, i32
  }
  func.func @transform_1(%arg0: i32) -> (i32, i32) {
    %c0_i32 = arith.constant 0 : i32
    %c0_i32_0 = arith.constant 0 : i32
    %c0_i32_1 = arith.constant 0 : i32
    return %c0_i32, %c0_i32_0 : i32, i32
  }
  func.func @transform_2(%arg0: i32) -> (i32, i32) {
    %c0_i32 = arith.constant 0 : i32
    %c0_i32_0 = arith.constant 0 : i32
    %c0_i32_1 = arith.constant 0 : i32
    return %c0_i32, %c0_i32_0 : i32, i32
  }
  func.func @transform_3(%arg0: i32) -> (i32, i32) {
    %c0_i32 = arith.constant 0 : i32
    %c0_i32_0 = arith.constant 0 : i32
    %c0_i32_1 = arith.constant 0 : i32
    return %c0_i32, %c0_i32_0 : i32, i32
  }
  func.func @transform_4(%arg0: i32) -> (i32, i32) {
    %c0_i32 = arith.constant 0 : i32
    %c0_i32_0 = arith.constant 0 : i32
    %c0_i32_1 = arith.constant 0 : i32
    return %c0_i32, %c0_i32_0 : i32, i32
  }
  func.func @transform_5(%arg0: i32) -> (i32, i32) {
    %c0_i32 = arith.constant 0 : i32
    %c0_i32_0 = arith.constant 0 : i32
    %c0_i32_1 = arith.constant 0 : i32
    return %c0_i32, %c0_i32_0 : i32, i32
  }
  func.func @transform_6(%arg0: i32) -> (i32, i32) {
    %c0_i32 = arith.constant 0 : i32
    %c0_i32_0 = arith.constant 0 : i32
    %c0_i32_1 = arith.constant 0 : i32
    return %c0_i32, %c0_i32_0 : i32, i32
  }
  func.func @transform_7(%arg0: i32) -> (i32, i32) {
    %c0_i32 = arith.constant 0 : i32
    %c0_i32_0 = arith.constant 0 : i32
    %c0_i32_1 = arith.constant 0 : i32
    return %c0_i32, %c0_i32_0 : i32, i32
  }
  func.func @transform_8(%arg0: i32) -> (i32, i32) {
    %c0_i32 = arith.constant 0 : i32
    %c0_i32_0 = arith.constant 0 : i32
    return %arg0, %c0_i32 : i32, i32
  }
}

</mosaic_0001>

<llo_original>
// kernel: tpu_custom_call.1
$region0: #{tpu_custom_call.1}
  #allocation0 [shape = 'u32[]', space=smem, size = 0x4, offset = 0x4, fixed_abs, tag = 'smem constant byte address 0x4 - core index']
  #allocation1 [shape = 'u32[72,128]{1,0:T(1,128)}', space=vmem, size = 0x9000, scoped, tag = 'internal scratch']
  %s0 = inlined_call_operand.vmem [shape: f32[8,256], index: 0, kind: input, shape index: {}]
  %s1 = inlined_call_operand.vmem [shape: f32[4,64], index: 1, kind: input, shape index: {}]
  %s2 = inlined_call_operand.vmem [shape: f32[1,64], index: 2, kind: input, shape index: {}]
  %s3 = inlined_call_operand.vmem [shape: f32[64,4], index: 3, kind: input, shape index: {}]
  %s4 = inlined_call_operand.vmem [shape: f32[1,4], index: 4, kind: input, shape index: {}]
  %s5 = inlined_call_operand.vmem [shape: f32[2,8], index: 5, kind: input, shape index: {}]
  %s6 = inlined_call_operand.vmem [shape: f32[8,2], index: 6, kind: input, shape index: {}]
  %s7 = inlined_call_operand.vmem [shape: f32[8,4], index: 7, kind: input, shape index: {}]
  %s8 = inlined_call_operand.hbm [shape: f32[8,256], index: 8, kind: output, shape index: {}]
  %s9 = sld [smem:[#allocation0]]
  $region42: #{tpu_custom_call.1} parent=0
    _
  %s11 = ssub.s32 1, %s9
  %s12 = scalar_select 0, %s11, %s9
  $region1: #{tpu_custom_call.1} parent=0
    #allocation2 [shape = 'u8[8192]{0}', space=vmem, size = 0x2000, scoped, tag = 'output window, operand 0, single buffered']
    #allocation3 [shape = 's32[1]{0}', space=sflag, size = 0x4, scoped, tag = 'scoped memory for tpu_custom_call.1']
    %13 = vsyncpa [#allocation3], 0
    // Predicated region
    $region2: #{tpu_custom_call.1} parent=1 // pred_check
      _
    $region3: #{tpu_custom_call.1} parent=1 // pred_check_branch
      %15 = sbr.rel (0) target = $region5
    $region4: #{tpu_custom_call.1} parent=1 // pred_region
      _
    $region5: #{tpu_custom_call.1} parent=1 // pred_fallthru
      _
    // Predicated region
    $region6: #{tpu_custom_call.1} parent=1 // pred_check
      _
    $region7: #{tpu_custom_call.1} parent=1 // pred_check_branch
      %17 = sbr.rel (0) target = $region9
    $region8: #{tpu_custom_call.1} parent=1 // pred_region
      _
    $region9: #{tpu_custom_call.1} parent=1 // pred_fallthru
      _
    // Predicated region
    $region10: #{tpu_custom_call.1} parent=1 // pred_check
      _
    $region11: #{tpu_custom_call.1} parent=1 // pred_check_branch
      %19 = sbr.rel (0) target = $region13
    $region12: #{tpu_custom_call.1} parent=1 // pred_region
      _
    $region13: #{tpu_custom_call.1} parent=1 // pred_fallthru
      _
    // Predicated region
    $region14: #{tpu_custom_call.1} parent=1 // pred_check
      _
    $region15: #{tpu_custom_call.1} parent=1 // pred_check_branch
      %21 = sbr.rel (0) target = $region17
    $region16: #{tpu_custom_call.1} parent=1 // pred_region
      _
    $region17: #{tpu_custom_call.1} parent=1 // pred_fallthru
      _
    // Predicated region
    $region18: #{tpu_custom_call.1} parent=1 // pred_check
      _
    $region19: #{tpu_custom_call.1} parent=1 // pred_check_branch
      %23 = sbr.rel (0) target = $region21
    $region20: #{tpu_custom_call.1} parent=1 // pred_region
      _
    $region21: #{tpu_custom_call.1} parent=1 // pred_fallthru
      _
    // Predicated region
    $region22: #{tpu_custom_call.1} parent=1 // pred_check
      _
    $region23: #{tpu_custom_call.1} parent=1 // pred_check_branch
      %25 = sbr.rel (0) target = $region25
    $region24: #{tpu_custom_call.1} parent=1 // pred_region
      _
    $region25: #{tpu_custom_call.1} parent=1 // pred_fallthru
      _
    // Predicated region
    $region26: #{tpu_custom_call.1} parent=1 // pred_check
      _
    $region27: #{tpu_custom_call.1} parent=1 // pred_check_branch
      %27 = sbr.rel (0) target = $region29
    $region28: #{tpu_custom_call.1} parent=1 // pred_region
      _
    $region29: #{tpu_custom_call.1} parent=1 // pred_fallthru
      _
    // Predicated region
    $region30: #{tpu_custom_call.1} parent=1 // pred_check
      _
    $region31: #{tpu_custom_call.1} parent=1 // pred_check_branch
      %29 = sbr.rel (0) target = $region33
    $region32: #{tpu_custom_call.1} parent=1 // pred_region
      _
    $region33: #{tpu_custom_call.1} parent=1 // pred_fallthru
      _
    %v30 = vld [vmem:[%s0] sm:$0xff]
    %v31 = vld [vmem:[%s0 + $0x8] sm:$0xff]
    %v32 = vadd.f32 %v30, %v31
    %33 = vadd.xlane.f32.xlu0 %v32
    %v34 = vpop.xlane.xlu0 %33
    %v35 = vrcp.pop 256.0
    %v36 = vmul.f32 256.0, %v35
    %v37 = vsub.f32 1.0, %v36
    %v38 = vmul.f32 %v35, %v37
    %v39 = vadd.f32 %v35, %v38
    %vm40 = vweird.f32 %v35
    %v41 = vsel %vm40, %v35, %v39
    %v42 = vmul.f32 %v34, %v41
    %v43 = vld [vmem:[%s5] sm:$0x3]
    %v44 = vld [vmem:[%s7] sm:$0xff]
    %v45 = vmul.f32 %v44, %v42
    %vm46 = vcmask 64512
    %v48 = vsel %vm46, %v43, 0
    %50 = vmatpush.msra.mxu0 0.0
    %51 = vmatpush.msra.mxu0 0.0
    %52 = vmatpush.msra.mxu0 0.0
    %53 = vmatpush.msra.mxu0 0.0
    %54 = vmatpush.msra.mxu0 0.0
    %55 = vmatpush.msra.mxu0 0.0
    %56 = vmatpush.msra.mxu0 0.0
    %57 = vmatpush.msra.mxu0 0.0
    %58 = vmatpush.msra.mxu0 0.0
    %59 = vmatpush.msra.mxu0 0.0
    %60 = vmatpush.msra.mxu0 0.0
    %61 = vmatpush.msra.mxu0 0.0
    %62 = vmatpush.msra.mxu0 0.0
    %63 = vmatpush.msra.mxu0 0.0
    %64 = vmatpush.msra.mxu0 0.0
    %65 = vmatpush.msra.mxu0 %v45
    %66 = vmatmul.f32.gmra.mxu0 %v48
    %v67 = vpop.f32.mrf.mxu0
    %v68 = vadd.f32 0.0, %v67
    %69 = vdwg.mxu0
    %v70 = vld [vmem:[%s1] sm:$0xf]
    %v71 = vld [vmem:[%s2] sm:$0x1]
    %v73 = vperm.slane %v71, 0
    %vm75 = vcmask 31744
    %v77 = vsel %vm75, %v68, 0
    %vm79 = vcmask 1043456
    %v81 = vsel %vm79, %v70, 0
    %83 = vmatpush.msra.mxu0 0.0
    %84 = vmatpush.msra.mxu0 0.0
    %85 = vmatpush.msra.mxu0 0.0
    %86 = vmatpush.msra.mxu0 0.0
    %87 = vmatpush.msra.mxu0 0.0
    %88 = vmatpush.msra.mxu0 0.0
    %89 = vmatpush.msra.mxu0 0.0
    %90 = vmatpush.msra.mxu0 0.0
    %91 = vmatpush.msra.mxu0 0.0
    %92 = vmatpush.msra.mxu0 0.0
    %93 = vmatpush.msra.mxu0 0.0
    %94 = vmatpush.msra.mxu0 0.0
    %95 = vmatpush.msra.mxu0 0.0
    %96 = vmatpush.msra.mxu0 0.0
    %97 = vmatpush.msra.mxu0 0.0
    %98 = vmatpush.msra.mxu0 %v81
    %99 = vmatmul.f32.gmra.mxu0 %v77
    %v100 = vpop.f32.mrf.mxu0
    %v101 = vadd.f32 %v73, %v100
    %102 = vdwg.mxu0
    %v103 = vmax.f32 %v101, 0.0
    %v104 = vld [vmem:[%s3] sm:$0xff]
    %v105 = vld [vmem:[%s3 + $0x8] sm:$0xff]
    %v106 = vld [vmem:[%s3 + $0x10] sm:$0xff]
    %v107 = vld [vmem:[%s3 + $0x18] sm:$0xff]
    %v108 = vld [vmem:[%s3 + $0x20] sm:$0xff]
    %v109 = vld [vmem:[%s3 + $0x28] sm:$0xff]
    %v110 = vld [vmem:[%s3 + $0x30] sm:$0xff]
    %v111 = vld [vmem:[%s3 + $0x38] sm:$0xff]
    %v112 = vld [vmem:[%s4] sm:$0x1]
    %v114 = vperm.slane %v112, 0
    %vm116 = vcmask 523264
    %v118 = vsel %vm116, %v103, 0
    %120 = vmatpush.msra.mxu0 0.0
    %121 = vmatpush.msra.mxu0 0.0
    %122 = vmatpush.msra.mxu0 0.0
    %123 = vmatpush.msra.mxu0 0.0
    %124 = vmatpush.msra.mxu0 0.0
    %125 = vmatpush.msra.mxu0 0.0
    %126 = vmatpush.msra.mxu0 0.0
    %127 = vmatpush.msra.mxu0 0.0
    %128 = vmatpush.msra.mxu0 %v111
    %129 = vmatpush.msra.mxu0 %v110
    %130 = vmatpush.msra.mxu0 %v109
    %131 = vmatpush.msra.mxu0 %v108
    %132 = vmatpush.msra.mxu0 %v107
    %133 = vmatpush.msra.mxu0 %v106
    %134 = vmatpush.msra.mxu0 %v105
    %135 = vmatpush.msra.mxu0 %v104
    %136 = vmatmul.f32.gmra.mxu0 %v118
    %v137 = vpop.f32.mrf.mxu0
    %v138 = vadd.f32 %v114, %v137
    %139 = vdwg.mxu0
    %v140 = vxor.u32 %v138, 2147483648
    %v141 = vmul.f32 %v140, 1.442695
    %v142 = vpow.pop %v141
    %v143 = vadd.f32 %v142, 1.0
    %v144 = vrcp.pop %v143
    %v145 = vmul.f32 %v143, %v144
    %v146 = vsub.f32 1.0, %v145
    %v147 = vmul.f32 %v144, %v146
    %v148 = vadd.f32 %v144, %v147
    %vm149 = vweird.f32 %v143
    %vm150 = vweird.f32 %v144
    %vm151 = vmor %vm149, %vm150
    %v152 = vsel %vm151, %v144, %v148
    %v153 = vand.u32 2147483647, %v143
    %vm154 = vcmp.eq.f32.partialorder %v153, 8.507059e+37
    %v155 = vand.u32 %v143, 2147483648
    %v156 = vor.u32 1.1754944e-38, %v155
    %v157 = vsel %vm154, %v156, %v152
    %v158 = vmul.f32 1.0, %v157
    %v159 = vld [vmem:[%s6] sm:$0xff]
    %vm160 = vcmask 15360
    %v162 = vsel %vm160, %v159, 0
    %vm164 = vcmask 1041408
    %v166 = vsel %vm164, %v158, 0
    %168 = vmatpush.msra.mxu0 0.0
    %169 = vmatpush.msra.mxu0 0.0
    %170 = vmatpush.msra.mxu0 0.0
    %171 = vmatpush.msra.mxu0 0.0
    %172 = vmatpush.msra.mxu0 0.0
    %173 = vmatpush.msra.mxu0 0.0
    %174 = vmatpush.msra.mxu0 0.0
    %175 = vmatpush.msra.mxu0 0.0
    %176 = vmatpush.msra.mxu0 0.0
    %177 = vmatpush.msra.mxu0 0.0
    %178 = vmatpush.msra.mxu0 0.0
    %179 = vmatpush.msra.mxu0 0.0
    %180 = vmatpush.msra.mxu0 0.0
    %181 = vmatpush.msra.mxu0 0.0
    %182 = vmatpush.msra.mxu0 0.0
    %183 = vmatpush.msra.mxu0 %v166
    %184 = vmatmul.f32.gmra.mxu0 %v162
    %v185 = vpop.f32.mrf.mxu0
    %v186 = vadd.f32 0.0, %v185
    %187 = vdwg.mxu0
    %v188 = vmul.f32 %v186, %v44
    %v189 = vsel %vm75, %v188, 0.0
    %190 = vadd.xlane.f32.xlu0 %v189
    %v191 = vpop.xlane.xlu0 %190
    %v192 = vmul.f32 %v30, %v191
    %v193 = vmul.f32 %v31, %v191
    %194 = vst [vmem:[#allocation2] sm:$0xff] %v192
    %195 = vst [vmem:[#allocation2 + $0x8] sm:$0xff] %v193
    // Predicated region
    $region34: #{tpu_custom_call.1} parent=1 // pred_check
      _
    $region35: #{tpu_custom_call.1} parent=1 // pred_check_branch
      %197 = sbr.rel (0) target = $region37
    $region36: #{tpu_custom_call.1} parent=1 // pred_region
      %199 = vsyncadd [#allocation3], 0
      %s201 = sshll.u32 [#allocation2], 4
      %s202 = int_to_ptr.vmem [resolvable:$true] %s201
      %s203 = sshll.u32 %s8, 4
      %s204 = int_to_ptr.hbm [resolvable:$true] %s203
      %206 = dma.vmem_to_hbm [thread:$0]  %s202, 256, %s204, [#allocation3]
    $region37: #{tpu_custom_call.1} parent=1 // pred_fallthru
      _
    // Predicated region
    $region38: #{tpu_custom_call.1} parent=1 // pred_check
      _
    $region39: #{tpu_custom_call.1} parent=1 // pred_check_branch
      %208 = sbr.rel (0) target = $region41
    $region40: #{tpu_custom_call.1} parent=1 // pred_region
      %210 = dma.done [#allocation3], 256
    $region41: #{tpu_custom_call.1} parent=1 // pred_fallthru
      _
    %211 = vsyncpa [#allocation3], 1

</llo_original>
